<compile_context>
chip_gen: v5e
topology: v5e:2x2
jax: 0.10.0
libtpu: 0.0.40
codegen_flags: <defaults>
</compile_context>

<pallas_src>
import math

import jax
import jax.numpy as jnp
from jax.experimental import pallas as pl
from jax.experimental.pallas import tpu as pltpu


def model_kernel(x1p_ref, x2_ref, w_ref, b_ref, out_ref):
    H, WC = out_ref.shape
    C = (x1p_ref.shape[1] - WC) // 4      # (W+4)*C - W*C == 4*C
    W = WC // C
    K1 = 25 * C                           # 5x5 conv, flattened K
    K3 = 9 * C                            # 3x3 conv, flattened K
    o1, o2, o3, o4 = 0, K1, K1 + K3, K1 + 2 * K3

    def conv_im2col(xp, w, b, KH, KW):
        """One im2col matmul on a flat-row padded buffer (all in vregs).

        xp : (H + KH - 1, (W + KW - 1) * C) value, lane index = x*C + ci
        w  : (KH*KW*C, C) flattened HWIO weight
        b  : (1, C) bias
        out: (H, W*C) flat-row conv result (+ bias)
        """
        cols = []
        for wi in range(W):
            xs = xp[:, wi * C:(wi + KW) * C]                       # (Hp, KW*C)
            cols.append(jnp.concatenate(
                [xs[kh:kh + H, :] for kh in range(KH)], axis=1))   # (H, KH*KW*C)
        patches = jnp.concatenate(cols, axis=0)                    # (W*H, KH*KW*C)
        o = jnp.dot(patches, w, preferred_element_type=jnp.float32) + b  # (W*H, C)
        # rows are ordered (w, h); regroup into flat-row layout (H, W*C)
        return jnp.concatenate([o[wi * H:(wi + 1) * H, :] for wi in range(W)],
                               axis=1)

    # conv1 (5x5, pad=2 applied in wrapper) + relu   -> v2   (H, W*C)
    v2 = jnp.maximum(
        conv_im2col(x1p_ref[...], w_ref[o1:o1 + K1, 0:C], b_ref[0:1, 0:C], 5, 5),
        0.0)

    # In-register zero padding for the 3x3 convs (no VMEM scratch round trip).
    zc = jnp.zeros((H, C), jnp.float32)
    zr = jnp.zeros((1, WC + 2 * C), jnp.float32)

    def pad3(v):
        return jnp.concatenate(
            [zr, jnp.concatenate([zc, v, zc], axis=1), zr], axis=0)  # (H+2,(W+2)*C)

    # conv2 (3x3, pad=1)                             -> v3
    v3 = conv_im2col(pad3(v2), w_ref[o2:o2 + K3, 0:C], b_ref[1:2, 0:C], 3, 3)

    # conv3 (3x3, pad=1) + x2, relu                  -> v6
    v4 = conv_im2col(pad3(v3), w_ref[o3:o3 + K3, 0:C], b_ref[2:3, 0:C], 3, 3)
    v6 = jnp.maximum(v4 + x2_ref[...], 0.0)          # (H, W*C)

    # conv4 (3x3, stride=2, no pad) -> single 1x1 output.  Weight/bias were
    # pre-tiled across W in the wrapper so one (1,9C)x(9C,W*C) matmul directly
    # produces the broadcast row (no in-kernel result replication needed).
    p4 = jnp.concatenate([v6[kh:kh + 1, 0:3 * C] for kh in range(3)], axis=1)  # (1, 9C)
    v7_row = jnp.dot(p4, w_ref[o4:o4 + K3, :],
                     preferred_element_type=jnp.float32) + b_ref[3:4, :]       # (1, W*C)

    # out = v6 + v7 broadcast over spatial -> single full-tile store
    out_ref[...] = v6 + v7_row


def model_forward(x1_nchw, x2_nchw, params):
    (w1, b1), (w2, b2), (w3, b3), (w4, b4) = params
    # NCHW -> HWC (batch of 1)
    x1 = jnp.transpose(x1_nchw[0], (1, 2, 0)).astype(jnp.float32)
    x2 = jnp.transpose(x2_nchw[0], (1, 2, 0)).astype(jnp.float32)
    H, W, C = x1.shape
    WC = W * C

    # torch's broadcast (v7 + v6) is only valid when conv4's output is 1x1.
    assert (H - 3) // 2 + 1 == 1 and (W - 3) // 2 + 1 == 1, \
        "final broadcast add requires conv4 output to be 1x1"

    # Lane-dense flat-row layouts; conv1's zero padding done here.
    x1p = jnp.pad(x1, ((2, 2), (2, 2), (0, 0))).reshape(H + 4, (W + 4) * C)
    x2f = x2.reshape(H, WC)

    # Pack weights into one array: w1/w2/w3 occupy lanes [0:C); conv4's weight
    # is pre-tiled across the W output columns and occupies all W*C lanes.
    def pad_cols(a):
        return jnp.pad(a, ((0, 0), (0, WC - a.shape[1])))

    w1f = w1.reshape(-1, C)                         # (25C, C)
    w2f = w2.reshape(-1, C)                         # ( 9C, C)
    w3f = w3.reshape(-1, C)                         # ( 9C, C)
    w4t = jnp.tile(w4.reshape(-1, C), (1, W))       # ( 9C, W*C)
    w_all = jnp.concatenate(
        [pad_cols(w1f), pad_cols(w2f), pad_cols(w3f), w4t], axis=0)   # (52C, W*C)

    # Pack biases into one array; conv4's bias pre-tiled across W.
    b_all = jnp.concatenate(
        [pad_cols(b1.reshape(1, C)), pad_cols(b2.reshape(1, C)),
         pad_cols(b3.reshape(1, C)), jnp.tile(b4.reshape(1, C), (1, W))],
        axis=0)                                     # (4, W*C)

    vmem = pl.BlockSpec(memory_space=pltpu.MemorySpace.VMEM)
    out_flat = pl.pallas_call(
        model_kernel,
        out_shape=jax.ShapeDtypeStruct((H, WC), jnp.float32),
        in_specs=[vmem] * 4,
        out_specs=vmem,
    )(x1p, x2f, w_all, b_all)

    # flat-row (H, W*C) -> (H, W, C) -> NCHW
    out = out_flat.reshape(H, W, C)
    return jnp.transpose(out, (2, 0, 1))[None]


def reference_forward(x1, x2, params):
    (w1, b1), (w2, b2), (w3, b3), (w4, b4) = params

    def conv(x, w_hwio, b, stride, pad):
        w = jnp.transpose(w_hwio, (3, 2, 0, 1))            # -> OIHW
        y = jax.lax.conv_general_dilated(
            x, w, (stride, stride), ((pad, pad), (pad, pad)),
            dimension_numbers=("NCHW", "OIHW", "NCHW"))
        return y + b.reshape(1, -1, 1, 1)

    v1 = conv(x1, w1, b1, 1, 2)
    v2 = jnp.maximum(v1, 0.0)
    v3 = conv(v2, w2, b2, 1, 1)
    v4 = conv(v3, w3, b3, 1, 1)
    v5 = v4 + x2
    v6 = jnp.maximum(v5, 0.0)
    v7 = conv(v6, w4, b4, 2, 0)
    return v7 + v6


def init_conv(key, kh, kw, cin, cout):
    kw_key, kb_key = jax.random.split(key)
    bound = 1.0 / math.sqrt(cin * kh * kw)
    w = jax.random.uniform(kw_key, (kh, kw, cin, cout), jnp.float32, -bound, bound)
    b = jax.random.uniform(kb_key, (1, cout), jnp.float32, -bound, bound)
    return w, b


if __name__ == "__main__":
    key = jax.random.PRNGKey(0)
    kx1, kx2, kc1, kc2, kc3, kc4 = jax.random.split(key, 6)

    N, C, H, W = 1, 16, 4, 4          # spatial=4 so conv4 output is 1x1 (broadcast valid)
    x1 = jax.random.normal(kx1, (N, C, H, W), jnp.float32)
    x2 = jax.random.normal(kx2, (N, C, H, W), jnp.float32)

    params = (
        init_conv(kc1, 5, 5, C, C),
        init_conv(kc2, 3, 3, C, C),
        init_conv(kc3, 3, 3, C, C),
        init_conv(kc4, 3, 3, C, C),
    )

    out = jax.jit(model_forward)(x1, x2, params)
    out = jax.block_until_ready(out)

    ref = reference_forward(x1, x2, params)
    assert out.shape == ref.shape == (N, C, H, W), (out.shape, ref.shape)
    if not jnp.allclose(out, ref, atol=1e-4, rtol=1e-4):
        raise RuntimeError("Pallas kernel does not match JAX reference")

    print("KERNEL_OK")
</pallas_src>

<mosaic_0001>
module attributes {stable_mosaic.version = 11 : i64} {
  func.func @model_kernel(%arg0: memref<8x128xf32, #tpu.memory_space<vmem>>, %arg1: memref<4x64xf32, #tpu.memory_space<vmem>>, %arg2: memref<832x64xf32, #tpu.memory_space<vmem>>, %arg3: memref<4x64xf32, #tpu.memory_space<vmem>>, %arg4: memref<4x64xf32, #tpu.memory_space<vmem>>) attributes {dimension_semantics = [], scalar_prefetch = 0 : i64, scratch_operands = 0 : i64, tpu.core_type = #tpu.core_type<tc>} {
    %c0 = arith.constant 0 : index
    %c0_0 = arith.constant 0 : index
    %0 = vector.load %arg0[%c0, %c0_0] : memref<8x128xf32, #tpu.memory_space<vmem>>, vector<8x128xf32>
    %c0_1 = arith.constant 0 : index
    %c0_2 = arith.constant 0 : index
    %1 = vector.load %arg2[%c0_1, %c0_2] : memref<832x64xf32, #tpu.memory_space<vmem>>, vector<400x16xf32>
    %c0_3 = arith.constant 0 : index
    %c0_4 = arith.constant 0 : index
    %2 = vector.load %arg3[%c0_3, %c0_4] : memref<4x64xf32, #tpu.memory_space<vmem>>, vector<1x16xf32>
    %3 = vector.extract_strided_slice %0 {offsets = [0, 0], sizes = [8, 80], strides = [1, 1]} : vector<8x128xf32> to vector<8x80xf32>
    %4 = vector.extract_strided_slice %3 {offsets = [0, 0], sizes = [4, 80], strides = [1, 1]} : vector<8x80xf32> to vector<4x80xf32>
    %5 = vector.extract_strided_slice %3 {offsets = [1, 0], sizes = [4, 80], strides = [1, 1]} : vector<8x80xf32> to vector<4x80xf32>
    %6 = vector.extract_strided_slice %3 {offsets = [2, 0], sizes = [4, 80], strides = [1, 1]} : vector<8x80xf32> to vector<4x80xf32>
    %7 = vector.extract_strided_slice %3 {offsets = [3, 0], sizes = [4, 80], strides = [1, 1]} : vector<8x80xf32> to vector<4x80xf32>
    %8 = vector.extract_strided_slice %3 {offsets = [4, 0], sizes = [4, 80], strides = [1, 1]} : vector<8x80xf32> to vector<4x80xf32>
    %9 = tpu.concatenate %4, %5, %6, %7, %8 in 1 : vector<4x80xf32>, vector<4x80xf32>, vector<4x80xf32>, vector<4x80xf32>, vector<4x80xf32> -> vector<4x400xf32>
    %10 = vector.extract_strided_slice %0 {offsets = [0, 16], sizes = [8, 80], strides = [1, 1]} : vector<8x128xf32> to vector<8x80xf32>
    %11 = vector.extract_strided_slice %10 {offsets = [0, 0], sizes = [4, 80], strides = [1, 1]} : vector<8x80xf32> to vector<4x80xf32>
    %12 = vector.extract_strided_slice %10 {offsets = [1, 0], sizes = [4, 80], strides = [1, 1]} : vector<8x80xf32> to vector<4x80xf32>
    %13 = vector.extract_strided_slice %10 {offsets = [2, 0], sizes = [4, 80], strides = [1, 1]} : vector<8x80xf32> to vector<4x80xf32>
    %14 = vector.extract_strided_slice %10 {offsets = [3, 0], sizes = [4, 80], strides = [1, 1]} : vector<8x80xf32> to vector<4x80xf32>
    %15 = vector.extract_strided_slice %10 {offsets = [4, 0], sizes = [4, 80], strides = [1, 1]} : vector<8x80xf32> to vector<4x80xf32>
    %16 = tpu.concatenate %11, %12, %13, %14, %15 in 1 : vector<4x80xf32>, vector<4x80xf32>, vector<4x80xf32>, vector<4x80xf32>, vector<4x80xf32> -> vector<4x400xf32>
    %17 = vector.extract_strided_slice %0 {offsets = [0, 32], sizes = [8, 80], strides = [1, 1]} : vector<8x128xf32> to vector<8x80xf32>
    %18 = vector.extract_strided_slice %17 {offsets = [0, 0], sizes = [4, 80], strides = [1, 1]} : vector<8x80xf32> to vector<4x80xf32>
    %19 = vector.extract_strided_slice %17 {offsets = [1, 0], sizes = [4, 80], strides = [1, 1]} : vector<8x80xf32> to vector<4x80xf32>
    %20 = vector.extract_strided_slice %17 {offsets = [2, 0], sizes = [4, 80], strides = [1, 1]} : vector<8x80xf32> to vector<4x80xf32>
    %21 = vector.extract_strided_slice %17 {offsets = [3, 0], sizes = [4, 80], strides = [1, 1]} : vector<8x80xf32> to vector<4x80xf32>
    %22 = vector.extract_strided_slice %17 {offsets = [4, 0], sizes = [4, 80], strides = [1, 1]} : vector<8x80xf32> to vector<4x80xf32>
    %23 = tpu.concatenate %18, %19, %20, %21, %22 in 1 : vector<4x80xf32>, vector<4x80xf32>, vector<4x80xf32>, vector<4x80xf32>, vector<4x80xf32> -> vector<4x400xf32>
    %24 = vector.extract_strided_slice %0 {offsets = [0, 48], sizes = [8, 80], strides = [1, 1]} : vector<8x128xf32> to vector<8x80xf32>
    %25 = vector.extract_strided_slice %24 {offsets = [0, 0], sizes = [4, 80], strides = [1, 1]} : vector<8x80xf32> to vector<4x80xf32>
    %26 = vector.extract_strided_slice %24 {offsets = [1, 0], sizes = [4, 80], strides = [1, 1]} : vector<8x80xf32> to vector<4x80xf32>
    %27 = vector.extract_strided_slice %24 {offsets = [2, 0], sizes = [4, 80], strides = [1, 1]} : vector<8x80xf32> to vector<4x80xf32>
    %28 = vector.extract_strided_slice %24 {offsets = [3, 0], sizes = [4, 80], strides = [1, 1]} : vector<8x80xf32> to vector<4x80xf32>
    %29 = vector.extract_strided_slice %24 {offsets = [4, 0], sizes = [4, 80], strides = [1, 1]} : vector<8x80xf32> to vector<4x80xf32>
    %30 = tpu.concatenate %25, %26, %27, %28, %29 in 1 : vector<4x80xf32>, vector<4x80xf32>, vector<4x80xf32>, vector<4x80xf32>, vector<4x80xf32> -> vector<4x400xf32>
    %31 = tpu.concatenate %9, %16, %23, %30 in 0 : vector<4x400xf32>, vector<4x400xf32>, vector<4x400xf32>, vector<4x400xf32> -> vector<16x400xf32>
    %cst = arith.constant dense<0.000000e+00> : vector<16x16xf32>
    %32 = tpu.matmul %31, %1, %cst {dimension_numbers = #tpu.dot_dimension_numbers<[1], [0], [0], [1], [0, 0, 1, 1], [], []>} : vector<16x400xf32>, vector<400x16xf32>, vector<16x16xf32> -> vector<16x16xf32>
    %33 = vector.broadcast %2 : vector<1x16xf32> to vector<16x16xf32>
    %34 = arith.addf %32, %33 : vector<16x16xf32>
    %35 = vector.extract_strided_slice %34 {offsets = [0, 0], sizes = [4, 16], strides = [1, 1]} : vector<16x16xf32> to vector<4x16xf32>
    %36 = vector.extract_strided_slice %34 {offsets = [4, 0], sizes = [4, 16], strides = [1, 1]} : vector<16x16xf32> to vector<4x16xf32>
    %37 = vector.extract_strided_slice %34 {offsets = [8, 0], sizes = [4, 16], strides = [1, 1]} : vector<16x16xf32> to vector<4x16xf32>
    %38 = vector.extract_strided_slice %34 {offsets = [12, 0], sizes = [4, 16], strides = [1, 1]} : vector<16x16xf32> to vector<4x16xf32>
    %39 = tpu.concatenate %35, %36, %37, %38 in 1 : vector<4x16xf32>, vector<4x16xf32>, vector<4x16xf32>, vector<4x16xf32> -> vector<4x64xf32>
    %cst_5 = arith.constant 0.000000e+00 : f32
    %40 = vector.broadcast %cst_5 : f32 to vector<4x64xf32>
    %41 = arith.maximumf %39, %40 : vector<4x64xf32>
    %cst_6 = arith.constant 0.000000e+00 : f32
    %42 = vector.broadcast %cst_6 : f32 to vector<4x16xf32>
    %cst_7 = arith.constant 0.000000e+00 : f32
    %43 = vector.broadcast %cst_7 : f32 to vector<1x96xf32>
    %44 = tpu.concatenate %42, %41, %42 in 1 : vector<4x16xf32>, vector<4x64xf32>, vector<4x16xf32> -> vector<4x96xf32>
    %45 = tpu.concatenate %43, %44, %43 in 0 : vector<1x96xf32>, vector<4x96xf32>, vector<1x96xf32> -> vector<6x96xf32>
    %c400 = arith.constant 400 : index
    %c0_8 = arith.constant 0 : index
    %46 = vector.load %arg2[%c400, %c0_8] : memref<832x64xf32, #tpu.memory_space<vmem>>, vector<144x16xf32>
    %c1 = arith.constant 1 : index
    %c0_9 = arith.constant 0 : index
    %47 = vector.load %arg3[%c1, %c0_9] : memref<4x64xf32, #tpu.memory_space<vmem>>, vector<1x16xf32>
    %48 = vector.extract_strided_slice %45 {offsets = [0, 0], sizes = [6, 48], strides = [1, 1]} : vector<6x96xf32> to vector<6x48xf32>
    %49 = vector.extract_strided_slice %48 {offsets = [0, 0], sizes = [4, 48], strides = [1, 1]} : vector<6x48xf32> to vector<4x48xf32>
    %50 = vector.extract_strided_slice %48 {offsets = [1, 0], sizes = [4, 48], strides = [1, 1]} : vector<6x48xf32> to vector<4x48xf32>
    %51 = vector.extract_strided_slice %48 {offsets = [2, 0], sizes = [4, 48], strides = [1, 1]} : vector<6x48xf32> to vector<4x48xf32>
    %52 = tpu.concatenate %49, %50, %51 in 1 : vector<4x48xf32>, vector<4x48xf32>, vector<4x48xf32> -> vector<4x144xf32>
    %53 = vector.extract_strided_slice %45 {offsets = [0, 16], sizes = [6, 48], strides = [1, 1]} : vector<6x96xf32> to vector<6x48xf32>
    %54 = vector.extract_strided_slice %53 {offsets = [0, 0], sizes = [4, 48], strides = [1, 1]} : vector<6x48xf32> to vector<4x48xf32>
    %55 = vector.extract_strided_slice %53 {offsets = [1, 0], sizes = [4, 48], strides = [1, 1]} : vector<6x48xf32> to vector<4x48xf32>
    %56 = vector.extract_strided_slice %53 {offsets = [2, 0], sizes = [4, 48], strides = [1, 1]} : vector<6x48xf32> to vector<4x48xf32>
    %57 = tpu.concatenate %54, %55, %56 in 1 : vector<4x48xf32>, vector<4x48xf32>, vector<4x48xf32> -> vector<4x144xf32>
    %58 = vector.extract_strided_slice %45 {offsets = [0, 32], sizes = [6, 48], strides = [1, 1]} : vector<6x96xf32> to vector<6x48xf32>
    %59 = vector.extract_strided_slice %58 {offsets = [0, 0], sizes = [4, 48], strides = [1, 1]} : vector<6x48xf32> to vector<4x48xf32>
    %60 = vector.extract_strided_slice %58 {offsets = [1, 0], sizes = [4, 48], strides = [1, 1]} : vector<6x48xf32> to vector<4x48xf32>
    %61 = vector.extract_strided_slice %58 {offsets = [2, 0], sizes = [4, 48], strides = [1, 1]} : vector<6x48xf32> to vector<4x48xf32>
    %62 = tpu.concatenate %59, %60, %61 in 1 : vector<4x48xf32>, vector<4x48xf32>, vector<4x48xf32> -> vector<4x144xf32>
    %63 = vector.extract_strided_slice %45 {offsets = [0, 48], sizes = [6, 48], strides = [1, 1]} : vector<6x96xf32> to vector<6x48xf32>
    %64 = vector.extract_strided_slice %63 {offsets = [0, 0], sizes = [4, 48], strides = [1, 1]} : vector<6x48xf32> to vector<4x48xf32>
    %65 = vector.extract_strided_slice %63 {offsets = [1, 0], sizes = [4, 48], strides = [1, 1]} : vector<6x48xf32> to vector<4x48xf32>
    %66 = vector.extract_strided_slice %63 {offsets = [2, 0], sizes = [4, 48], strides = [1, 1]} : vector<6x48xf32> to vector<4x48xf32>
    %67 = tpu.concatenate %64, %65, %66 in 1 : vector<4x48xf32>, vector<4x48xf32>, vector<4x48xf32> -> vector<4x144xf32>
    %68 = tpu.concatenate %52, %57, %62, %67 in 0 : vector<4x144xf32>, vector<4x144xf32>, vector<4x144xf32>, vector<4x144xf32> -> vector<16x144xf32>
    %cst_10 = arith.constant dense<0.000000e+00> : vector<16x16xf32>
    %69 = tpu.matmul %68, %46, %cst_10 {dimension_numbers = #tpu.dot_dimension_numbers<[1], [0], [0], [1], [0, 0, 1, 1], [], []>} : vector<16x144xf32>, vector<144x16xf32>, vector<16x16xf32> -> vector<16x16xf32>
    %70 = vector.broadcast %47 : vector<1x16xf32> to vector<16x16xf32>
    %71 = arith.addf %69, %70 : vector<16x16xf32>
    %72 = vector.extract_strided_slice %71 {offsets = [0, 0], sizes = [4, 16], strides = [1, 1]} : vector<16x16xf32> to vector<4x16xf32>
    %73 = vector.extract_strided_slice %71 {offsets = [4, 0], sizes = [4, 16], strides = [1, 1]} : vector<16x16xf32> to vector<4x16xf32>
    %74 = vector.extract_strided_slice %71 {offsets = [8, 0], sizes = [4, 16], strides = [1, 1]} : vector<16x16xf32> to vector<4x16xf32>
    %75 = vector.extract_strided_slice %71 {offsets = [12, 0], sizes = [4, 16], strides = [1, 1]} : vector<16x16xf32> to vector<4x16xf32>
    %76 = tpu.concatenate %72, %73, %74, %75 in 1 : vector<4x16xf32>, vector<4x16xf32>, vector<4x16xf32>, vector<4x16xf32> -> vector<4x64xf32>
    %77 = tpu.concatenate %42, %76, %42 in 1 : vector<4x16xf32>, vector<4x64xf32>, vector<4x16xf32> -> vector<4x96xf32>
    %78 = tpu.concatenate %43, %77, %43 in 0 : vector<1x96xf32>, vector<4x96xf32>, vector<1x96xf32> -> vector<6x96xf32>
    %c544 = arith.constant 544 : index
    %c0_11 = arith.constant 0 : index
    %79 = vector.load %arg2[%c544, %c0_11] : memref<832x64xf32, #tpu.memory_space<vmem>>, vector<144x16xf32>
    %c2 = arith.constant 2 : index
    %c0_12 = arith.constant 0 : index
    %80 = vector.load %arg3[%c2, %c0_12] : memref<4x64xf32, #tpu.memory_space<vmem>>, vector<1x16xf32>
    %81 = vector.extract_strided_slice %78 {offsets = [0, 0], sizes = [6, 48], strides = [1, 1]} : vector<6x96xf32> to vector<6x48xf32>
    %82 = vector.extract_strided_slice %81 {offsets = [0, 0], sizes = [4, 48], strides = [1, 1]} : vector<6x48xf32> to vector<4x48xf32>
    %83 = vector.extract_strided_slice %81 {offsets = [1, 0], sizes = [4, 48], strides = [1, 1]} : vector<6x48xf32> to vector<4x48xf32>
    %84 = vector.extract_strided_slice %81 {offsets = [2, 0], sizes = [4, 48], strides = [1, 1]} : vector<6x48xf32> to vector<4x48xf32>
    %85 = tpu.concatenate %82, %83, %84 in 1 : vector<4x48xf32>, vector<4x48xf32>, vector<4x48xf32> -> vector<4x144xf32>
    %86 = vector.extract_strided_slice %78 {offsets = [0, 16], sizes = [6, 48], strides = [1, 1]} : vector<6x96xf32> to vector<6x48xf32>
    %87 = vector.extract_strided_slice %86 {offsets = [0, 0], sizes = [4, 48], strides = [1, 1]} : vector<6x48xf32> to vector<4x48xf32>
    %88 = vector.extract_strided_slice %86 {offsets = [1, 0], sizes = [4, 48], strides = [1, 1]} : vector<6x48xf32> to vector<4x48xf32>
    %89 = vector.extract_strided_slice %86 {offsets = [2, 0], sizes = [4, 48], strides = [1, 1]} : vector<6x48xf32> to vector<4x48xf32>
    %90 = tpu.concatenate %87, %88, %89 in 1 : vector<4x48xf32>, vector<4x48xf32>, vector<4x48xf32> -> vector<4x144xf32>
    %91 = vector.extract_strided_slice %78 {offsets = [0, 32], sizes = [6, 48], strides = [1, 1]} : vector<6x96xf32> to vector<6x48xf32>
    %92 = vector.extract_strided_slice %91 {offsets = [0, 0], sizes = [4, 48], strides = [1, 1]} : vector<6x48xf32> to vector<4x48xf32>
    %93 = vector.extract_strided_slice %91 {offsets = [1, 0], sizes = [4, 48], strides = [1, 1]} : vector<6x48xf32> to vector<4x48xf32>
    %94 = vector.extract_strided_slice %91 {offsets = [2, 0], sizes = [4, 48], strides = [1, 1]} : vector<6x48xf32> to vector<4x48xf32>
    %95 = tpu.concatenate %92, %93, %94 in 1 : vector<4x48xf32>, vector<4x48xf32>, vector<4x48xf32> -> vector<4x144xf32>
    %96 = vector.extract_strided_slice %78 {offsets = [0, 48], sizes = [6, 48], strides = [1, 1]} : vector<6x96xf32> to vector<6x48xf32>
    %97 = vector.extract_strided_slice %96 {offsets = [0, 0], sizes = [4, 48], strides = [1, 1]} : vector<6x48xf32> to vector<4x48xf32>
    %98 = vector.extract_strided_slice %96 {offsets = [1, 0], sizes = [4, 48], strides = [1, 1]} : vector<6x48xf32> to vector<4x48xf32>
    %99 = vector.extract_strided_slice %96 {offsets = [2, 0], sizes = [4, 48], strides = [1, 1]} : vector<6x48xf32> to vector<4x48xf32>
    %100 = tpu.concatenate %97, %98, %99 in 1 : vector<4x48xf32>, vector<4x48xf32>, vector<4x48xf32> -> vector<4x144xf32>
    %101 = tpu.concatenate %85, %90, %95, %100 in 0 : vector<4x144xf32>, vector<4x144xf32>, vector<4x144xf32>, vector<4x144xf32> -> vector<16x144xf32>
    %cst_13 = arith.constant dense<0.000000e+00> : vector<16x16xf32>
    %102 = tpu.matmul %101, %79, %cst_13 {dimension_numbers = #tpu.dot_dimension_numbers<[1], [0], [0], [1], [0, 0, 1, 1], [], []>} : vector<16x144xf32>, vector<144x16xf32>, vector<16x16xf32> -> vector<16x16xf32>
    %103 = vector.broadcast %80 : vector<1x16xf32> to vector<16x16xf32>
    %104 = arith.addf %102, %103 : vector<16x16xf32>
    %105 = vector.extract_strided_slice %104 {offsets = [0, 0], sizes = [4, 16], strides = [1, 1]} : vector<16x16xf32> to vector<4x16xf32>
    %106 = vector.extract_strided_slice %104 {offsets = [4, 0], sizes = [4, 16], strides = [1, 1]} : vector<16x16xf32> to vector<4x16xf32>
    %107 = vector.extract_strided_slice %104 {offsets = [8, 0], sizes = [4, 16], strides = [1, 1]} : vector<16x16xf32> to vector<4x16xf32>
    %108 = vector.extract_strided_slice %104 {offsets = [12, 0], sizes = [4, 16], strides = [1, 1]} : vector<16x16xf32> to vector<4x16xf32>
    %109 = tpu.concatenate %105, %106, %107, %108 in 1 : vector<4x16xf32>, vector<4x16xf32>, vector<4x16xf32>, vector<4x16xf32> -> vector<4x64xf32>
    %c0_14 = arith.constant 0 : index
    %c0_15 = arith.constant 0 : index
    %110 = vector.load %arg1[%c0_14, %c0_15] : memref<4x64xf32, #tpu.memory_space<vmem>>, vector<4x64xf32>
    %111 = arith.addf %109, %110 : vector<4x64xf32>
    %cst_16 = arith.constant 0.000000e+00 : f32
    %112 = vector.broadcast %cst_16 : f32 to vector<4x64xf32>
    %113 = arith.maximumf %111, %112 : vector<4x64xf32>
    %114 = vector.extract_strided_slice %113 {offsets = [0, 0], sizes = [1, 48], strides = [1, 1]} : vector<4x64xf32> to vector<1x48xf32>
    %115 = vector.extract_strided_slice %113 {offsets = [1, 0], sizes = [1, 48], strides = [1, 1]} : vector<4x64xf32> to vector<1x48xf32>
    %116 = vector.extract_strided_slice %113 {offsets = [2, 0], sizes = [1, 48], strides = [1, 1]} : vector<4x64xf32> to vector<1x48xf32>
    %117 = tpu.concatenate %114, %115, %116 in 1 : vector<1x48xf32>, vector<1x48xf32>, vector<1x48xf32> -> vector<1x144xf32>
    %c688 = arith.constant 688 : index
    %c0_17 = arith.constant 0 : index
    %118 = vector.load %arg2[%c688, %c0_17] : memref<832x64xf32, #tpu.memory_space<vmem>>, vector<144x64xf32>
    %cst_18 = arith.constant dense<0.000000e+00> : vector<1x64xf32>
    %119 = tpu.matmul %117, %118, %cst_18 {dimension_numbers = #tpu.dot_dimension_numbers<[1], [0], [0], [1], [0, 0, 1, 1], [], []>} : vector<1x144xf32>, vector<144x64xf32>, vector<1x64xf32> -> vector<1x64xf32>
    %c3 = arith.constant 3 : index
    %c0_19 = arith.constant 0 : index
    %120 = vector.load %arg3[%c3, %c0_19] : memref<4x64xf32, #tpu.memory_space<vmem>>, vector<1x64xf32>
    %121 = arith.addf %119, %120 : vector<1x64xf32>
    %122 = vector.broadcast %121 : vector<1x64xf32> to vector<4x64xf32>
    %123 = arith.addf %113, %122 : vector<4x64xf32>
    %c0_20 = arith.constant 0 : index
    %c0_21 = arith.constant 0 : index
    %124 = vector.load %arg4[%c0_20, %c0_21] : memref<4x64xf32, #tpu.memory_space<vmem>>, vector<4x64xf32>
    tpu.vector_store %arg4[%c0_20, %c0_21], %123 {strides = array<i32>} : memref<4x64xf32, #tpu.memory_space<vmem>>, vector<4x64xf32>,
    return
  }
}

</mosaic_0001>

<llo_original>
// kernel: model_forward.1
$region0: #{model_forward.1}
  #allocation0 [shape = 'u32[]', space=smem, size = 0x4, offset = 0x4, fixed_abs, tag = 'smem constant byte address 0x4 - core index']
  #allocation1 [shape = 'u32[72,128]{1,0:T(1,128)}', space=vmem, size = 0x9000, scoped, tag = 'internal scratch']
  %s0 = inlined_call_operand.vmem [shape: f32[8,128], index: 0, kind: input, shape index: {}]
  %s1 = inlined_call_operand.vmem [shape: f32[4,64], index: 1, kind: input, shape index: {}]
  %s2 = inlined_call_operand.vmem [shape: f32[832,64], index: 2, kind: input, shape index: {}]
  %s3 = inlined_call_operand.vmem [shape: f32[4,64], index: 3, kind: input, shape index: {}]
  %s4 = inlined_call_operand.vmem [shape: f32[4,64], index: 4, kind: output, shape index: {}]
  %s5 = sld [smem:[#allocation0]]
  $region26: #{model_forward.1} parent=0
    _
  %s7 = ssub.s32 1, %s5
  %s8 = scalar_select 0, %s7, %s5
  // Predicated region
  $region2: #{model_forward.1} parent=0 // pred_check
    _
  $region3: #{model_forward.1} parent=0 // pred_check_branch
    %10 = sbr.rel (0) target = $region5
  $region4: #{model_forward.1} parent=0 // pred_region
    _
  $region5: #{model_forward.1} parent=0 // pred_fallthru
    _
  // Predicated region
  $region6: #{model_forward.1} parent=0 // pred_check
    _
  $region7: #{model_forward.1} parent=0 // pred_check_branch
    %12 = sbr.rel (0) target = $region9
  $region8: #{model_forward.1} parent=0 // pred_region
    _
  $region9: #{model_forward.1} parent=0 // pred_fallthru
    _
  // Predicated region
  $region10: #{model_forward.1} parent=0 // pred_check
    _
  $region11: #{model_forward.1} parent=0 // pred_check_branch
    %14 = sbr.rel (0) target = $region13
  $region12: #{model_forward.1} parent=0 // pred_region
    _
  $region13: #{model_forward.1} parent=0 // pred_fallthru
    _
  // Predicated region
  $region14: #{model_forward.1} parent=0 // pred_check
    _
  $region15: #{model_forward.1} parent=0 // pred_check_branch
    %16 = sbr.rel (0) target = $region17
  $region16: #{model_forward.1} parent=0 // pred_region
    _
  $region17: #{model_forward.1} parent=0 // pred_fallthru
    _
  %v17 = vld [vmem:[%s0] sm:$0xff]
  %v18 = vld [vmem:[%s2] sm:$0xff]
  %v19 = vld [vmem:[%s2 + $0x8] sm:$0xff]
  %v20 = vld [vmem:[%s2 + $0x10] sm:$0xff]
  %v21 = vld [vmem:[%s2 + $0x18] sm:$0xff]
  %v22 = vld [vmem:[%s2 + $0x20] sm:$0xff]
  %v23 = vld [vmem:[%s2 + $0x28] sm:$0xff]
  %v24 = vld [vmem:[%s2 + $0x30] sm:$0xff]
  %v25 = vld [vmem:[%s2 + $0x38] sm:$0xff]
  %v26 = vld [vmem:[%s2 + $0x40] sm:$0xff]
  %v27 = vld [vmem:[%s2 + $0x48] sm:$0xff]
  %v28 = vld [vmem:[%s2 + $0x50] sm:$0xff]
  %v29 = vld [vmem:[%s2 + $0x58] sm:$0xff]
  %v30 = vld [vmem:[%s2 + $0x60] sm:$0xff]
  %v31 = vld [vmem:[%s2 + $0x68] sm:$0xff]
  %v32 = vld [vmem:[%s2 + $0x70] sm:$0xff]
  %v33 = vld [vmem:[%s2 + $0x78] sm:$0xff]
  %v34 = vld [vmem:[%s2 + $0x80] sm:$0xff]
  %v35 = vld [vmem:[%s2 + $0x88] sm:$0xff]
  %v36 = vld [vmem:[%s2 + $0x90] sm:$0xff]
  %v37 = vld [vmem:[%s2 + $0x98] sm:$0xff]
  %v38 = vld [vmem:[%s2 + $0xa0] sm:$0xff]
  %v39 = vld [vmem:[%s2 + $0xa8] sm:$0xff]
  %v40 = vld [vmem:[%s2 + $0xb0] sm:$0xff]
  %v41 = vld [vmem:[%s2 + $0xb8] sm:$0xff]
  %v42 = vld [vmem:[%s2 + $0xc0] sm:$0xff]
  %v43 = vld [vmem:[%s2 + $0xc8] sm:$0xff]
  %v44 = vld [vmem:[%s2 + $0xd0] sm:$0xff]
  %v45 = vld [vmem:[%s2 + $0xd8] sm:$0xff]
  %v46 = vld [vmem:[%s2 + $0xe0] sm:$0xff]
  %v47 = vld [vmem:[%s2 + $0xe8] sm:$0xff]
  %v48 = vld [vmem:[%s2 + $0xf0] sm:$0xff]
  %v49 = vld [vmem:[%s2 + $0xf8] sm:$0xff]
  %v50 = vld [vmem:[%s2 + $0x100] sm:$0xff]
  %v51 = vld [vmem:[%s2 + $0x108] sm:$0xff]
  %v52 = vld [vmem:[%s2 + $0x110] sm:$0xff]
  %v53 = vld [vmem:[%s2 + $0x118] sm:$0xff]
  %v54 = vld [vmem:[%s2 + $0x120] sm:$0xff]
  %v55 = vld [vmem:[%s2 + $0x128] sm:$0xff]
  %v56 = vld [vmem:[%s2 + $0x130] sm:$0xff]
  %v57 = vld [vmem:[%s2 + $0x138] sm:$0xff]
  %v58 = vld [vmem:[%s2 + $0x140] sm:$0xff]
  %v59 = vld [vmem:[%s2 + $0x148] sm:$0xff]
  %v60 = vld [vmem:[%s2 + $0x150] sm:$0xff]
  %v61 = vld [vmem:[%s2 + $0x158] sm:$0xff]
  %v62 = vld [vmem:[%s2 + $0x160] sm:$0xff]
  %v63 = vld [vmem:[%s2 + $0x168] sm:$0xff]
  %v64 = vld [vmem:[%s2 + $0x170] sm:$0xff]
  %v65 = vld [vmem:[%s2 + $0x178] sm:$0xff]
  %v66 = vld [vmem:[%s2 + $0x180] sm:$0xff]
  %v67 = vld [vmem:[%s2 + $0x188] sm:$0xff]
  %v68 = vld [vmem:[%s3] sm:$0x1]
  %v70 = vrot.slane %v17, 1
  %71 = vrot.lane.b32.xlu0 %v70, 80
  %v72 = vpop.permute.xlu0 %71
  %v74 = vrot.slane %v17, 2
  %75 = vrot.lane.b32.xlu0 %v74, 32
  %v76 = vpop.permute.xlu0 %75
  %v78 = vrot.slane %v17, 3
  %79 = vrot.lane.b32.xlu0 %v78, 112
  %v80 = vpop.permute.xlu0 %79
  %v82 = vrot.slane %v17, 4
  %83 = vrot.lane.b32.xlu0 %v82, 64
  %v84 = vpop.permute.xlu0 %83
  %vm86 = vcmask 654336
  %v87 = vsel %vm86, %v17, %v72
  %vm88 = vcmask 261120
  %v89 = vsel %vm88, %v72, %v76
  %vm90 = vcmask 916480
  %v91 = vsel %vm90, %v89, %v80
  %vm92 = vcmask 523264
  %v93 = vsel %vm92, %v80, %v84
  %94 = vrot.lane.b32.xlu0 %v17, 112
  %v95 = vpop.permute.xlu0 %94
  %97 = vrot.lane.b32.xlu0 %v70, 64
  %v98 = vpop.permute.xlu0 %97
  %100 = vrot.lane.b32.xlu0 %v74, 16
  %v101 = vpop.permute.xlu0 %100
  %103 = vrot.lane.b32.xlu0 %v78, 96
  %v104 = vpop.permute.xlu0 %103
  %106 = vrot.lane.b32.xlu0 %v82, 48
  %v107 = vpop.permute.xlu0 %106
  %v109 = vsel %vm86, %v95, %v98
  %v110 = vsel %vm88, %v98, %v101
  %v111 = vsel %vm90, %v110, %v104
  %v112 = vsel %vm92, %v104, %v107
  %113 = vrot.lane.b32.xlu0 %v17, 96
  %v114 = vpop.permute.xlu0 %113
  %116 = vrot.lane.b32.xlu0 %v70, 48
  %v117 = vpop.permute.xlu0 %116
  %120 = vrot.lane.b32.xlu0 %v78, 80
  %v121 = vpop.permute.xlu0 %120
  %123 = vrot.lane.b32.xlu0 %v82, 32
  %v124 = vpop.permute.xlu0 %123
  %v126 = vsel %vm86, %v114, %v117
  %v127 = vsel %vm88, %v117, %v74
  %v128 = vsel %vm90, %v127, %v121
  %v129 = vsel %vm92, %v121, %v124
  %130 = vrot.lane.b32.xlu0 %v17, 80
  %v131 = vpop.permute.xlu0 %130
  %133 = vrot.lane.b32.xlu0 %v70, 32
  %v134 = vpop.permute.xlu0 %133
  %136 = vrot.lane.b32.xlu0 %v74, 112
  %v137 = vpop.permute.xlu0 %136
  %139 = vrot.lane.b32.xlu0 %v78, 64
  %v140 = vpop.permute.xlu0 %139
  %142 = vrot.lane.b32.xlu0 %v82, 16
  %v143 = vpop.permute.xlu0 %142
  %v145 = vsel %vm86, %v131, %v134
  %v146 = vsel %vm88, %v134, %v137
  %v147 = vsel %vm90, %v146, %v140
  %v148 = vsel %vm92, %v140, %v143
  %v152 = vrot.slane %v109, 4
  %v153 = vrot.slane %v111, 4
  %v154 = vrot.slane %v112, 4
  %v155 = vrot.slane %v107, 4
  %v163 = vrot.slane %v145, 4
  %v164 = vrot.slane %v147, 4
  %v165 = vrot.slane %v148, 4
  %v166 = vrot.slane %v143, 4
  %vm171 = vcmask 1043456
  %v172 = vsel %vm171, %v87, %v152
  %v173 = vsel %vm171, %v91, %v153
  %v174 = vsel %vm171, %v93, %v154
  %v175 = vsel %vm171, %v84, %v155
  %v176 = vsel %vm171, %v126, %v163
  %v177 = vsel %vm171, %v128, %v164
  %v178 = vsel %vm171, %v129, %v165
  %v179 = vsel %vm171, %v124, %v166
  %v180 = vperm.slane %v68, 0
  %vm181 = vcmask 130048
  %v183 = vsel %vm181, %v175, 0
  %v186 = vsel %vm181, %v179, 0
  %188 = vmatpush.msra.mxu0 %v33
  %189 = vmatpush.msra.mxu0 %v32
  %190 = vmatpush.msra.mxu0 %v31
  %191 = vmatpush.msra.mxu0 %v30
  %192 = vmatpush.msra.mxu0 %v29
  %193 = vmatpush.msra.mxu0 %v28
  %194 = vmatpush.msra.mxu0 %v27
  %195 = vmatpush.msra.mxu0 %v26
  %196 = vmatpush.msra.mxu0 %v25
  %197 = vmatpush.msra.mxu0 %v24
  %198 = vmatpush.msra.mxu0 %v23
  %199 = vmatpush.msra.mxu0 %v22
  %200 = vmatpush.msra.mxu0 %v21
  %201 = vmatpush.msra.mxu0 %v20
  %202 = vmatpush.msra.mxu0 %v19
  %203 = vmatpush.msra.mxu0 %v18
  %204 = vmatmul.f32.gmra.mxu0 %v172
  %v205 = vpop.f32.mrf.mxu0
  %v206 = vadd.f32 %v180, %v205
  %207 = vmatmul.f32.gmra.mxu0 %v176
  %v208 = vpop.f32.mrf.mxu0
  %v209 = vadd.f32 %v180, %v208
  %210 = vdwg.mxu0
  %211 = vmatpush.msra.mxu0 %v49
  %212 = vmatpush.msra.mxu0 %v48
  %213 = vmatpush.msra.mxu0 %v47
  %214 = vmatpush.msra.mxu0 %v46
  %215 = vmatpush.msra.mxu0 %v45
  %216 = vmatpush.msra.mxu0 %v44
  %217 = vmatpush.msra.mxu0 %v43
  %218 = vmatpush.msra.mxu0 %v42
  %219 = vmatpush.msra.mxu0 %v41
  %220 = vmatpush.msra.mxu0 %v40
  %221 = vmatpush.msra.mxu0 %v39
  %222 = vmatpush.msra.mxu0 %v38
  %223 = vmatpush.msra.mxu0 %v37
  %224 = vmatpush.msra.mxu0 %v36
  %225 = vmatpush.msra.mxu0 %v35
  %226 = vmatpush.msra.mxu0 %v34
  %227 = vmatmul.f32.gmra.mxu0 %v173
  %v228 = vpop.f32.mrf.mxu0
  %v229 = vadd.f32 %v206, %v228
  %230 = vmatmul.f32.gmra.mxu0 %v177
  %v231 = vpop.f32.mrf.mxu0
  %v232 = vadd.f32 %v209, %v231
  %233 = vdwg.mxu0
  %234 = vmatpush.msra.mxu0 %v65
  %235 = vmatpush.msra.mxu0 %v64
  %236 = vmatpush.msra.mxu0 %v63
  %237 = vmatpush.msra.mxu0 %v62
  %238 = vmatpush.msra.mxu0 %v61
  %239 = vmatpush.msra.mxu0 %v60
  %240 = vmatpush.msra.mxu0 %v59
  %241 = vmatpush.msra.mxu0 %v58
  %242 = vmatpush.msra.mxu0 %v57
  %243 = vmatpush.msra.mxu0 %v56
  %244 = vmatpush.msra.mxu0 %v55
  %245 = vmatpush.msra.mxu0 %v54
  %246 = vmatpush.msra.mxu0 %v53
  %247 = vmatpush.msra.mxu0 %v52
  %248 = vmatpush.msra.mxu0 %v51
  %249 = vmatpush.msra.mxu0 %v50
  %250 = vmatmul.f32.gmra.mxu0 %v174
  %v251 = vpop.f32.mrf.mxu0
  %v252 = vadd.f32 %v229, %v251
  %253 = vmatmul.f32.gmra.mxu0 %v178
  %v254 = vpop.f32.mrf.mxu0
  %v255 = vadd.f32 %v232, %v254
  %256 = vdwg.mxu0
  %257 = vmatpush.msra.mxu0 0.0
  %258 = vmatpush.msra.mxu0 0.0
  %259 = vmatpush.msra.mxu0 0.0
  %260 = vmatpush.msra.mxu0 0.0
  %261 = vmatpush.msra.mxu0 0.0
  %262 = vmatpush.msra.mxu0 0.0
  %263 = vmatpush.msra.mxu0 0.0
  %264 = vmatpush.msra.mxu0 0.0
  %265 = vmatpush.msra.mxu0 0.0
  %266 = vmatpush.msra.mxu0 0.0
  %267 = vmatpush.msra.mxu0 0.0
  %268 = vmatpush.msra.mxu0 0.0
  %269 = vmatpush.msra.mxu0 0.0
  %270 = vmatpush.msra.mxu0 0.0
  %271 = vmatpush.msra.mxu0 %v67
  %272 = vmatpush.msra.mxu0 %v66
  %273 = vmatmul.f32.gmra.mxu0 %v183
  %v274 = vpop.f32.mrf.mxu0
  %v275 = vadd.f32 %v252, %v274
  %276 = vmatmul.f32.gmra.mxu0 %v186
  %v277 = vpop.f32.mrf.mxu0
  %v278 = vadd.f32 %v255, %v277
  %279 = vdwg.mxu0
  %v281 = vrot.slane %v275, 4
  %282 = vrot.lane.b32.xlu0 %v281, 16
  %v283 = vpop.permute.xlu0 %282
  %286 = vrot.lane.b32.xlu0 %v278, 32
  %v287 = vpop.permute.xlu0 %286
  %v289 = vrot.slane %v278, 4
  %290 = vrot.lane.b32.xlu0 %v289, 48
  %v291 = vpop.permute.xlu0 %290
  %v293 = vsel %vm181, %v275, %v283
  %v294 = vsel %vm88, %v293, %v287
  %vm295 = vcmask 392192
  %v296 = vsel %vm295, %v294, %v291
  %v297 = vmax.f32 %v296, 0.0
  %299 = vrot.lane.b32.xlu0 %v297, 16
  %v300 = vpop.permute.xlu0 %299
  %v302 = vsel %vm181, 0.0, %v300
  %v303 = vsel %vm86, %v302, 0.0
  %v305 = vrot.slane %v303, 7
  %vm307 = vcmask 1040384
  %v308 = vsel %vm307, 0.0, %v305
  %vm309 = vcmask 1044480
  %v310 = vsel %vm309, %v308, 0.0
  %v311 = vld [vmem:[%s2 + $0x190] sm:$0xff]
  %v312 = vld [vmem:[%s2 + $0x198] sm:$0xff]
  %v313 = vld [vmem:[%s2 + $0x1a0] sm:$0xff]
  %v314 = vld [vmem:[%s2 + $0x1a8] sm:$0xff]
  %v315 = vld [vmem:[%s2 + $0x1b0] sm:$0xff]
  %v316 = vld [vmem:[%s2 + $0x1b8] sm:$0xff]
  %v317 = vld [vmem:[%s2 + $0x1c0] sm:$0xff]
  %v318 = vld [vmem:[%s2 + $0x1c8] sm:$0xff]
  %v319 = vld [vmem:[%s2 + $0x1d0] sm:$0xff]
  %v320 = vld [vmem:[%s2 + $0x1d8] sm:$0xff]
  %v321 = vld [vmem:[%s2 + $0x1e0] sm:$0xff]
  %v322 = vld [vmem:[%s2 + $0x1e8] sm:$0xff]
  %v323 = vld [vmem:[%s2 + $0x1f0] sm:$0xff]
  %v324 = vld [vmem:[%s2 + $0x1f8] sm:$0xff]
  %v325 = vld [vmem:[%s2 + $0x200] sm:$0xff]
  %v326 = vld [vmem:[%s2 + $0x208] sm:$0xff]
  %v327 = vld [vmem:[%s2 + $0x210] sm:$0xff]
  %v328 = vld [vmem:[%s2 + $0x218] sm:$0xff]
  %v329 = vld [vmem:[%s3 + $0x1] sm:$0x1]
  %v331 = vrot.slane %v310, 1
  %332 = vrot.lane.b32.xlu0 %v331, 48
  %v333 = vpop.permute.xlu0 %332
  %v335 = vrot.slane %v310, 2
  %336 = vrot.lane.b32.xlu0 %v335, 96
  %v337 = vpop.permute.xlu0 %336
  %v339 = vsel %vm295, %v310, %v333
  %vm340 = vcmask 785408
  %v341 = vsel %vm340, %v339, %v337
  %342 = vrot.lane.b32.xlu0 %v310, 112
  %v343 = vpop.permute.xlu0 %342
  %345 = vrot.lane.b32.xlu0 %v331, 32
  %v346 = vpop.permute.xlu0 %345
  %348 = vrot.lane.b32.xlu0 %v335, 80
  %v349 = vpop.permute.xlu0 %348
  %v351 = vsel %vm295, %v343, %v346
  %v352 = vsel %vm340, %v351, %v349
  %353 = vrot.lane.b32.xlu0 %v310, 96
  %v354 = vpop.permute.xlu0 %353
  %356 = vrot.lane.b32.xlu0 %v331, 16
  %v357 = vpop.permute.xlu0 %356
  %359 = vrot.lane.b32.xlu0 %v335, 64
  %v360 = vpop.permute.xlu0 %359
  %v362 = vsel %vm295, %v354, %v357
  %v363 = vsel %vm340, %v362, %v360
  %364 = vrot.lane.b32.xlu0 %v310, 80
  %v365 = vpop.permute.xlu0 %364
  %368 = vrot.lane.b32.xlu0 %v335, 48
  %v369 = vpop.permute.xlu0 %368
  %v371 = vsel %vm295, %v365, %v331
  %v372 = vsel %vm340, %v371, %v369
  %v374 = vrot.slane %v352, 4
  %v375 = vrot.slane %v349, 4
  %v379 = vrot.slane %v372, 4
  %v380 = vrot.slane %v369, 4
  %v383 = vsel %vm171, %v341, %v374
  %v384 = vsel %vm171, %v337, %v375
  %v385 = vsel %vm171, %v363, %v379
  %v386 = vsel %vm171, %v360, %v380
  %v387 = vperm.slane %v329, 0
  %v389 = vsel %vm181, %v384, 0
  %v392 = vsel %vm181, %v386, 0
  %394 = vmatpush.msra.mxu0 %v326
  %395 = vmatpush.msra.mxu0 %v325
  %396 = vmatpush.msra.mxu0 %v324
  %397 = vmatpush.msra.mxu0 %v323
  %398 = vmatpush.msra.mxu0 %v322
  %399 = vmatpush.msra.mxu0 %v321
  %400 = vmatpush.msra.mxu0 %v320
  %401 = vmatpush.msra.mxu0 %v319
  %402 = vmatpush.msra.mxu0 %v318
  %403 = vmatpush.msra.mxu0 %v317
  %404 = vmatpush.msra.mxu0 %v316
  %405 = vmatpush.msra.mxu0 %v315
  %406 = vmatpush.msra.mxu0 %v314
  %407 = vmatpush.msra.mxu0 %v313
  %408 = vmatpush.msra.mxu0 %v312
  %409 = vmatpush.msra.mxu0 %v311
  %410 = vmatmul.f32.gmra.mxu0 %v383
  %v411 = vpop.f32.mrf.mxu0
  %v412 = vadd.f32 %v387, %v411
  %413 = vmatmul.f32.gmra.mxu0 %v385
  %v414 = vpop.f32.mrf.mxu0
  %v415 = vadd.f32 %v387, %v414
  %416 = vdwg.mxu0
  %417 = vmatpush.msra.mxu0 0.0
  %418 = vmatpush.msra.mxu0 0.0
  %419 = vmatpush.msra.mxu0 0.0
  %420 = vmatpush.msra.mxu0 0.0
  %421 = vmatpush.msra.mxu0 0.0
  %422 = vmatpush.msra.mxu0 0.0
  %423 = vmatpush.msra.mxu0 0.0
  %424 = vmatpush.msra.mxu0 0.0
  %425 = vmatpush.msra.mxu0 0.0
  %426 = vmatpush.msra.mxu0 0.0
  %427 = vmatpush.msra.mxu0 0.0
  %428 = vmatpush.msra.mxu0 0.0
  %429 = vmatpush.msra.mxu0 0.0
  %430 = vmatpush.msra.mxu0 0.0
  %431 = vmatpush.msra.mxu0 %v328
  %432 = vmatpush.msra.mxu0 %v327
  %433 = vmatmul.f32.gmra.mxu0 %v389
  %v434 = vpop.f32.mrf.mxu0
  %v435 = vadd.f32 %v412, %v434
  %436 = vmatmul.f32.gmra.mxu0 %v392
  %v437 = vpop.f32.mrf.mxu0
  %v438 = vadd.f32 %v415, %v437
  %439 = vdwg.mxu0
  %v441 = vrot.slane %v435, 4
  %442 = vrot.lane.b32.xlu0 %v441, 16
  %v443 = vpop.permute.xlu0 %442
  %446 = vrot.lane.b32.xlu0 %v438, 32
  %v447 = vpop.permute.xlu0 %446
  %v449 = vrot.slane %v438, 4
  %450 = vrot.lane.b32.xlu0 %v449, 48
  %v451 = vpop.permute.xlu0 %450
  %v453 = vsel %vm181, %v435, %v443
  %v454 = vsel %vm88, %v453, %v447
  %v455 = vsel %vm295, %v454, %v451
  %457 = vrot.lane.b32.xlu0 %v455, 16
  %v458 = vpop.permute.xlu0 %457
  %v460 = vsel %vm181, 0.0, %v458
  %v461 = vsel %vm86, %v460, 0.0
  %v463 = vrot.slane %v461, 7
  %v465 = vsel %vm307, 0.0, %v463
  %v466 = vsel %vm309, %v465, 0.0
  %v467 = vld [vmem:[%s2 + $0x220] sm:$0xff]
  %v468 = vld [vmem:[%s2 + $0x228] sm:$0xff]
  %v469 = vld [vmem:[%s2 + $0x230] sm:$0xff]
  %v470 = vld [vmem:[%s2 + $0x238] sm:$0xff]
  %v471 = vld [vmem:[%s2 + $0x240] sm:$0xff]
  %v472 = vld [vmem:[%s2 + $0x248] sm:$0xff]
  %v473 = vld [vmem:[%s2 + $0x250] sm:$0xff]
  %v474 = vld [vmem:[%s2 + $0x258] sm:$0xff]
  %v475 = vld [vmem:[%s2 + $0x260] sm:$0xff]
  %v476 = vld [vmem:[%s2 + $0x268] sm:$0xff]
  %v477 = vld [vmem:[%s2 + $0x270] sm:$0xff]
  %v478 = vld [vmem:[%s2 + $0x278] sm:$0xff]
  %v479 = vld [vmem:[%s2 + $0x280] sm:$0xff]
  %v480 = vld [vmem:[%s2 + $0x288] sm:$0xff]
  %v481 = vld [vmem:[%s2 + $0x290] sm:$0xff]
  %v482 = vld [vmem:[%s2 + $0x298] sm:$0xff]
  %v483 = vld [vmem:[%s2 + $0x2a0] sm:$0xff]
  %v484 = vld [vmem:[%s2 + $0x2a8] sm:$0xff]
  %v485 = vld [vmem:[%s3 + $0x2] sm:$0x1]
  %v487 = vrot.slane %v466, 1
  %488 = vrot.lane.b32.xlu0 %v487, 48
  %v489 = vpop.permute.xlu0 %488
  %v491 = vrot.slane %v466, 2
  %492 = vrot.lane.b32.xlu0 %v491, 96
  %v493 = vpop.permute.xlu0 %492
  %v495 = vsel %vm295, %v466, %v489
  %v496 = vsel %vm340, %v495, %v493
  %497 = vrot.lane.b32.xlu0 %v466, 112
  %v498 = vpop.permute.xlu0 %497
  %500 = vrot.lane.b32.xlu0 %v487, 32
  %v501 = vpop.permute.xlu0 %500
  %503 = vrot.lane.b32.xlu0 %v491, 80
  %v504 = vpop.permute.xlu0 %503
  %v506 = vsel %vm295, %v498, %v501
  %v507 = vsel %vm340, %v506, %v504
  %508 = vrot.lane.b32.xlu0 %v466, 96
  %v509 = vpop.permute.xlu0 %508
  %511 = vrot.lane.b32.xlu0 %v487, 16
  %v512 = vpop.permute.xlu0 %511
  %514 = vrot.lane.b32.xlu0 %v491, 64
  %v515 = vpop.permute.xlu0 %514
  %v517 = vsel %vm295, %v509, %v512
  %v518 = vsel %vm340, %v517, %v515
  %519 = vrot.lane.b32.xlu0 %v466, 80
  %v520 = vpop.permute.xlu0 %519
  %523 = vrot.lane.b32.xlu0 %v491, 48
  %v524 = vpop.permute.xlu0 %523
  %v526 = vsel %vm295, %v520, %v487
  %v527 = vsel %vm340, %v526, %v524
  %v529 = vrot.slane %v507, 4
  %v530 = vrot.slane %v504, 4
  %v534 = vrot.slane %v527, 4
  %v535 = vrot.slane %v524, 4
  %v538 = vsel %vm171, %v496, %v529
  %v539 = vsel %vm171, %v493, %v530
  %v540 = vsel %vm171, %v518, %v534
  %v541 = vsel %vm171, %v515, %v535
  %v542 = vperm.slane %v485, 0
  %v544 = vsel %vm181, %v539, 0
  %v547 = vsel %vm181, %v541, 0
  %549 = vmatpush.msra.mxu0 %v482
  %550 = vmatpush.msra.mxu0 %v481
  %551 = vmatpush.msra.mxu0 %v480
  %552 = vmatpush.msra.mxu0 %v479
  %553 = vmatpush.msra.mxu0 %v478
  %554 = vmatpush.msra.mxu0 %v477
  %555 = vmatpush.msra.mxu0 %v476
  %556 = vmatpush.msra.mxu0 %v475
  %557 = vmatpush.msra.mxu0 %v474
  %558 = vmatpush.msra.mxu0 %v473
  %559 = vmatpush.msra.mxu0 %v472
  %560 = vmatpush.msra.mxu0 %v471
  %561 = vmatpush.msra.mxu0 %v470
  %562 = vmatpush.msra.mxu0 %v469
  %563 = vmatpush.msra.mxu0 %v468
  %564 = vmatpush.msra.mxu0 %v467
  %565 = vmatmul.f32.gmra.mxu0 %v538
  %v566 = vpop.f32.mrf.mxu0
  %v567 = vadd.f32 %v542, %v566
  %568 = vmatmul.f32.gmra.mxu0 %v540
  %v569 = vpop.f32.mrf.mxu0
  %v570 = vadd.f32 %v542, %v569
  %571 = vdwg.mxu0
  %572 = vmatpush.msra.mxu0 0.0
  %573 = vmatpush.msra.mxu0 0.0
  %574 = vmatpush.msra.mxu0 0.0
  %575 = vmatpush.msra.mxu0 0.0
  %576 = vmatpush.msra.mxu0 0.0
  %577 = vmatpush.msra.mxu0 0.0
  %578 = vmatpush.msra.mxu0 0.0
  %579 = vmatpush.msra.mxu0 0.0
  %580 = vmatpush.msra.mxu0 0.0
  %581 = vmatpush.msra.mxu0 0.0
  %582 = vmatpush.msra.mxu0 0.0
  %583 = vmatpush.msra.mxu0 0.0
  %584 = vmatpush.msra.mxu0 0.0
  %585 = vmatpush.msra.mxu0 0.0
  %586 = vmatpush.msra.mxu0 %v484
  %587 = vmatpush.msra.mxu0 %v483
  %588 = vmatmul.f32.gmra.mxu0 %v544
  %v589 = vpop.f32.mrf.mxu0
  %v590 = vadd.f32 %v567, %v589
  %591 = vmatmul.f32.gmra.mxu0 %v547
  %v592 = vpop.f32.mrf.mxu0
  %v593 = vadd.f32 %v570, %v592
  %594 = vdwg.mxu0
  %v596 = vrot.slane %v590, 4
  %597 = vrot.lane.b32.xlu0 %v596, 16
  %v598 = vpop.permute.xlu0 %597
  %601 = vrot.lane.b32.xlu0 %v593, 32
  %v602 = vpop.permute.xlu0 %601
  %v604 = vrot.slane %v593, 4
  %605 = vrot.lane.b32.xlu0 %v604, 48
  %v606 = vpop.permute.xlu0 %605
  %v608 = vsel %vm181, %v590, %v598
  %v609 = vsel %vm88, %v608, %v602
  %v610 = vsel %vm295, %v609, %v606
  %v611 = vld [vmem:[%s1] sm:$0xf]
  %v612 = vadd.f32 %v610, %v611
  %v613 = vmax.f32 %v612, 0.0
  %v615 = vrot.slane %v613, 1
  %616 = vrot.lane.b32.xlu0 %v615, 48
  %v617 = vpop.permute.xlu0 %616
  %v619 = vrot.slane %v613, 2
  %620 = vrot.lane.b32.xlu0 %v619, 96
  %v621 = vpop.permute.xlu0 %620
  %v623 = vsel %vm295, %v613, %v617
  %v624 = vsel %vm340, %v623, %v621
  %v625 = vld [vmem:[%s2 + $0x2b0] sm:$0xff]
  %v626 = vld [vmem:[%s2 + $0x2b8] sm:$0xff]
  %v627 = vld [vmem:[%s2 + $0x2c0] sm:$0xff]
  %v628 = vld [vmem:[%s2 + $0x2c8] sm:$0xff]
  %v629 = vld [vmem:[%s2 + $0x2d0] sm:$0xff]
  %v630 = vld [vmem:[%s2 + $0x2d8] sm:$0xff]
  %v631 = vld [vmem:[%s2 + $0x2e0] sm:$0xff]
  %v632 = vld [vmem:[%s2 + $0x2e8] sm:$0xff]
  %v633 = vld [vmem:[%s2 + $0x2f0] sm:$0xff]
  %v634 = vld [vmem:[%s2 + $0x2f8] sm:$0xff]
  %v635 = vld [vmem:[%s2 + $0x300] sm:$0xff]
  %v636 = vld [vmem:[%s2 + $0x308] sm:$0xff]
  %v637 = vld [vmem:[%s2 + $0x310] sm:$0xff]
  %v638 = vld [vmem:[%s2 + $0x318] sm:$0xff]
  %v639 = vld [vmem:[%s2 + $0x320] sm:$0xff]
  %v640 = vld [vmem:[%s2 + $0x328] sm:$0xff]
  %v641 = vld [vmem:[%s2 + $0x330] sm:$0xff]
  %v642 = vld [vmem:[%s2 + $0x338] sm:$0xff]
  %v643 = vld [vmem:[%s3 + $0x3] sm:$0x1]
  %v644 = vsel %vm181, %v621, 0
  %646 = vmatpush.msra.mxu0 %v640
  %647 = vmatpush.msra.mxu0 %v639
  %648 = vmatpush.msra.mxu0 %v638
  %649 = vmatpush.msra.mxu0 %v637
  %650 = vmatpush.msra.mxu0 %v636
  %651 = vmatpush.msra.mxu0 %v635
  %652 = vmatpush.msra.mxu0 %v634
  %653 = vmatpush.msra.mxu0 %v633
  %654 = vmatpush.msra.mxu0 %v632
  %655 = vmatpush.msra.mxu0 %v631
  %656 = vmatpush.msra.mxu0 %v630
  %657 = vmatpush.msra.mxu0 %v629
  %658 = vmatpush.msra.mxu0 %v628
  %659 = vmatpush.msra.mxu0 %v627
  %660 = vmatpush.msra.mxu0 %v626
  %661 = vmatpush.msra.mxu0 %v625
  %662 = vmatmul.f32.gmra.mxu0 %v624
  %v663 = vpop.f32.mrf.mxu0
  %v664 = vadd.f32 %v643, %v663
  %665 = vdwg.mxu0
  %666 = vmatpush.msra.mxu0 0.0
  %667 = vmatpush.msra.mxu0 0.0
  %668 = vmatpush.msra.mxu0 0.0
  %669 = vmatpush.msra.mxu0 0.0
  %670 = vmatpush.msra.mxu0 0.0
  %671 = vmatpush.msra.mxu0 0.0
  %672 = vmatpush.msra.mxu0 0.0
  %673 = vmatpush.msra.mxu0 0.0
  %674 = vmatpush.msra.mxu0 0.0
  %675 = vmatpush.msra.mxu0 0.0
  %676 = vmatpush.msra.mxu0 0.0
  %677 = vmatpush.msra.mxu0 0.0
  %678 = vmatpush.msra.mxu0 0.0
  %679 = vmatpush.msra.mxu0 0.0
  %680 = vmatpush.msra.mxu0 %v642
  %681 = vmatpush.msra.mxu0 %v641
  %682 = vmatmul.f32.gmra.mxu0 %v644
  %v683 = vpop.f32.mrf.mxu0
  %v684 = vadd.f32 %v664, %v683
  %685 = vdwg.mxu0
  %v686 = vperm.slane %v684, 0
  %v687 = vadd.f32 %v613, %v686
  %vm688 = vcmask 519168
  %689 = vst.msk [vmem:[%s4] sm:$0xf] %vm688, %v687
  // Predicated region
  $region18: #{model_forward.1} parent=0 // pred_check
    _
  $region19: #{model_forward.1} parent=0 // pred_check_branch
    %691 = sbr.rel (0) target = $region21
  $region20: #{model_forward.1} parent=0 // pred_region
    _
  $region21: #{model_forward.1} parent=0 // pred_fallthru
    _
  // Predicated region
  $region22: #{model_forward.1} parent=0 // pred_check
    _
  $region23: #{model_forward.1} parent=0 // pred_check_branch
    %693 = sbr.rel (0) target = $region25
  $region24: #{model_forward.1} parent=0 // pred_region
    _
  $region25: #{model_forward.1} parent=0 // pred_fallthru
    _

</llo_original>
